<compile_context>
chip_gen: v7x
topology: tpu7x:2x2x1
jax: 0.10.0
libtpu: 0.0.40
codegen_flags: <defaults>
</compile_context>

<pallas_src>
import functools

import jax
import jax.numpy as jnp
from jax.experimental import pallas as pl
from jax.experimental.pallas import tpu as pltpu


def _pow_const(x, g):
    """x ** g for a compile-time constant g, without a tensor-exponent pow.

    Returns None when the result is the constant 1.0 (g == 0).  Small positive
    integer exponents are strength-reduced to VPU multiplies via exponentiation
    by squaring; anything else falls back to jnp.power with a scalar exponent.
    """
    g = float(g)
    if g == 0.0:
        return None
    if g.is_integer() and 0 < g <= 16:
        gi = int(g)
        result = None
        base = x
        while gi > 0:
            if gi & 1:
                result = base if result is None else result * base
            gi >>= 1
            if gi:
                base = base * base
        return result
    return jnp.power(x, g)


def _asl_kernel(logits_ref, target_ref, out_ref, *, gamma_pos, gamma_neg, eps):
    x = logits_ref[...].astype(jnp.float32)             # [TN, C]
    tgt = target_ref[...]                                # [TN, 1] int32
    tn, c = x.shape

    # log-softmax along classes; exp(z) computed once (EUP) and reused for both
    # the log-sum-exp and the softmax probabilities.
    m = jnp.max(x, axis=-1, keepdims=True)
    z = x - m
    e = jnp.exp(z)                                       # [TN, C]
    s = jnp.sum(e, axis=-1, keepdims=True)               # [TN, 1]
    log_preds = z - jnp.log(s)                           # exact log-softmax
    # probs only feed the (detached) focusing weight -> approx reciprocal is fine
    p = e * pl.reciprocal(s, approx=True)                # softmax probs

    # one-hot "scatter_(1, target, 1)" via iota compare (VPU, no XLU gather).
    cls_ids = jax.lax.broadcasted_iota(jnp.int32, (tn, c), 1)
    is_target = cls_ids == tgt                           # bool [TN, C]

    # asymmetric focusing weight, strength-reduced:
    #   w = (1-p)**gamma_pos on the target class, p**gamma_neg elsewhere
    pos_w = _pow_const(1.0 - p, gamma_pos)               # None == constant 1.0
    neg_w = _pow_const(p, gamma_neg)

    # Fuse one-hot + label smoothing + focusing weight into one coefficient:
    #   smoothed = (1-eps)*onehot + eps/C ; coeff = smoothed * w
    pos_coeff = 1.0 - eps + eps / c
    neg_coeff = eps / c
    pos_term = pos_coeff if pos_w is None else pos_coeff * pos_w
    if neg_coeff == 0.0:                                 # eps == 0 -> pure one-hot
        neg_term = 0.0
    else:
        neg_term = neg_coeff if neg_w is None else neg_coeff * neg_w
    coeff = jnp.where(is_target, pos_term, neg_term)     # [TN, C]

    # per-row loss sum; 'mean' reduction over the true N is a tiny XLA epilogue.
    out_ref[...] = -jnp.sum(coeff * log_preds, axis=-1, keepdims=True)


def _pick_tile_and_vmem(n, c, in_itemsize):
    """Pick a batch tile + VMEM limit sized on the f32-intermediate footprint."""
    try:
        vmem_cap = int(pltpu.get_tpu_info().vmem_capacity_bytes)
    except Exception:  # pragma: no cover - conservative fallback (treat as v7x)
        vmem_cap = 64 * 1024 * 1024
    big_vmem = vmem_cap >= 100 * 1024 * 1024             # v5e / v6e: 128 MiB
    # ~6 live full-tile f32 temps in the body + 2x double-buffered native input:
    #   2 MiB f32 block -> ~16 MiB footprint (safe under v7x's 64 MiB VMEM)
    #   4 MiB f32 block -> ~32 MiB footprint (fine on v5e/v6e's 128 MiB)
    target_f32_block = (4 if big_vmem else 2) * 1024 * 1024
    vmem_limit = (64 if big_vmem else 48) * 1024 * 1024

    tile_n = max(8, target_f32_block // (4 * c))
    tile_n = (tile_n // 8) * 8
    if tile_n >= n:
        if n >= 16:
            # keep >= 2 grid steps so both of v7x's TensorCores get work
            tile_n = ((-(-n // 2)) + 7) // 8 * 8
        else:
            tile_n = n
    return int(tile_n), int(vmem_limit)


def asl_single_label(inputs, target, *, gamma_pos=0.0, gamma_neg=4.0, eps=0.1,
                     tile_n=None, vmem_limit_bytes=None):
    """Pallas TPU implementation of ASLSingleLabel.forward (reduction='mean')."""
    n, c = inputs.shape
    target_2d = target.astype(jnp.int32).reshape(n, 1)

    auto_tile, auto_vmem = _pick_tile_and_vmem(n, c, jnp.dtype(inputs.dtype).itemsize)
    if tile_n is None:
        tile_n = auto_tile
    else:
        # validate user-supplied tile: multiple of 8 sublanes, or the full batch.
        tile_n = int(tile_n)
        tile_n = n if tile_n >= n else max(8, (tile_n // 8) * 8)
    if vmem_limit_bytes is None:
        vmem_limit_bytes = auto_vmem

    kernel = functools.partial(
        _asl_kernel,
        gamma_pos=float(gamma_pos),
        gamma_neg=float(gamma_neg),
        eps=float(eps),
    )

    # No batch padding: ragged tail block is masked by Pallas (OOB reads only
    # affect that block's own rows, whose OOB output writes are dropped).
    row_loss = pl.pallas_call(
        kernel,
        out_shape=jax.ShapeDtypeStruct((n, 1), jnp.float32),
        grid=(pl.cdiv(n, tile_n),),
        in_specs=[
            pl.BlockSpec((tile_n, c), lambda i: (i, 0)),   # logits tile (native dtype)
            pl.BlockSpec((tile_n, 1), lambda i: (i, 0)),   # targets tile
        ],
        out_specs=pl.BlockSpec((tile_n, 1), lambda i: (i, 0)),
        compiler_params=pltpu.CompilerParams(
            dimension_semantics=("parallel",),             # shards across TCs on v7x
            vmem_limit_bytes=int(vmem_limit_bytes),
        ),
    )(inputs, target_2d)

    # 'mean' reduction over the true batch size.
    return jnp.sum(row_loss) / n


def _asl_reference(inputs, target, *, gamma_pos=0.0, gamma_neg=4.0, eps=0.1):
    """Pure-JAX reference mirroring the PyTorch module."""
    n, c = inputs.shape
    log_preds = jax.nn.log_softmax(inputs.astype(jnp.float32), axis=-1)
    targets = jax.nn.one_hot(target, c, dtype=jnp.float32)
    anti = 1.0 - targets
    xs_pos = jnp.exp(log_preds) * targets
    xs_neg = (1.0 - jnp.exp(log_preds)) * anti
    w = jnp.power(1.0 - xs_pos - xs_neg, gamma_pos * targets + gamma_neg * anti)
    log_preds = log_preds * w
    smoothed = targets * (1.0 - eps) + eps / c
    loss = -(smoothed * log_preds).sum(axis=-1)
    return loss.mean()


if __name__ == "__main__":
    key = jax.random.PRNGKey(0)
    k1, k2, k3, k4 = jax.random.split(key, 4)

    # Case 1: small aligned batch (single block).
    N, C = 8, 32
    inputs = jax.random.normal(k1, (N, C), dtype=jnp.float32)
    target = jax.random.randint(k2, (N,), 0, C, dtype=jnp.int32)
    loss = jax.block_until_ready(
        asl_single_label(inputs, target, gamma_pos=0.0, gamma_neg=4.0, eps=0.1))
    ref = _asl_reference(inputs, target, gamma_pos=0.0, gamma_neg=4.0, eps=0.1)
    # tolerance accounts for the approximate EUP reciprocal feeding the focusing weight
    assert jnp.allclose(loss, ref, rtol=1e-3, atol=1e-5), (loss, ref)

    # Case 2: ragged batch (N not a multiple of the tile) exercises the masked
    # tail block that replaced the wrapper-side jnp.pad.
    N2, C2 = 19, 32
    inputs2 = jax.random.normal(k3, (N2, C2), dtype=jnp.float32)
    target2 = jax.random.randint(k4, (N2,), 0, C2, dtype=jnp.int32)
    loss2 = jax.block_until_ready(
        asl_single_label(inputs2, target2, gamma_pos=0.0, gamma_neg=4.0, eps=0.1,
                         tile_n=8))
    ref2 = _asl_reference(inputs2, target2, gamma_pos=0.0, gamma_neg=4.0, eps=0.1)
    assert jnp.allclose(loss2, ref2, rtol=1e-3, atol=1e-5), (loss2, ref2)

    print("KERNEL_OK")
</pallas_src>

<mosaic_0001>
module attributes {stable_mosaic.version = 11 : i64} {
  func.func @_asl_kernel(%arg0: i32, %arg1: memref<8x32xf32, #tpu.memory_space<vmem>>, %arg2: memref<8x1xi32, #tpu.memory_space<vmem>>, %arg3: memref<8x1xf32, #tpu.memory_space<vmem>>) attributes {dimension_semantics = [#tpu.dimension_semantics<parallel>], iteration_bounds = array<i64: 1>, scalar_prefetch = 0 : i64, scratch_operands = 0 : i64, tpu.core_type = #tpu.core_type<tc>, window_params = [{transform_indices = @transform_0, window_bounds = array<i64: 8, 32>}, {transform_indices = @transform_1, window_bounds = array<i64: 8, 1>}, {transform_indices = @transform_2, window_bounds = array<i64: 8, 1>}]} {
    %c0 = arith.constant 0 : index
    %c0_0 = arith.constant 0 : index
    %0 = vector.load %arg1[%c0, %c0_0] : memref<8x32xf32, #tpu.memory_space<vmem>>, vector<8x32xf32>
    %c0_1 = arith.constant 0 : index
    %c0_2 = arith.constant 0 : index
    %1 = vector.load %arg2[%c0_1, %c0_2] : memref<8x1xi32, #tpu.memory_space<vmem>>, vector<8x1xi32>
    %cst = arith.constant dense<0xFF800000> : vector<8xf32>
    %2 = vector.multi_reduction <maximumf>, %0, %cst [1] : vector<8x32xf32> to vector<8xf32>
    %3 = vector.shape_cast %2 : vector<8xf32> to vector<8x1xf32>
    %4 = vector.broadcast %3 : vector<8x1xf32> to vector<8x32xf32>
    %5 = arith.subf %0, %4 : vector<8x32xf32>
    %6 = math.exp %5 : vector<8x32xf32>
    %cst_3 = arith.constant dense<0.000000e+00> : vector<8xf32>
    %7 = vector.multi_reduction <add>, %6, %cst_3 [1] : vector<8x32xf32> to vector<8xf32>
    %8 = vector.shape_cast %7 : vector<8xf32> to vector<8x1xf32>
    %9 = math.log %8 : vector<8x1xf32>
    %10 = vector.broadcast %9 : vector<8x1xf32> to vector<8x32xf32>
    %11 = arith.subf %5, %10 : vector<8x32xf32>
    %12 = tpu.reciprocal %8 {approx = true} : vector<8x1xf32> -> vector<8x1xf32>
    %13 = vector.broadcast %12 : vector<8x1xf32> to vector<8x32xf32>
    %14 = arith.mulf %6, %13 : vector<8x32xf32>
    %15 = tpu.iota {dimensions = array<i32: 1>} : vector<8x32xi32>
    %16 = vector.broadcast %1 : vector<8x1xi32> to vector<8x32xi32>
    %17 = arith.cmpi eq, %15, %16 : vector<8x32xi32>
    %18 = arith.mulf %14, %14 : vector<8x32xf32>
    %19 = arith.mulf %18, %18 : vector<8x32xf32>
    %cst_4 = arith.constant 3.125000e-03 : f32
    %20 = vector.broadcast %cst_4 : f32 to vector<8x32xf32>
    %21 = arith.mulf %20, %19 : vector<8x32xf32>
    %cst_5 = arith.constant 0.903124988 : f32
    %22 = vector.broadcast %cst_5 : f32 to vector<8x32xf32>
    %23 = arith.select %17, %22, %21 : vector<8x32xi1>, vector<8x32xf32>
    %24 = arith.mulf %23, %11 : vector<8x32xf32>
    %cst_6 = arith.constant dense<0.000000e+00> : vector<8xf32>
    %25 = vector.multi_reduction <add>, %24, %cst_6 [1] : vector<8x32xf32> to vector<8xf32>
    %26 = vector.shape_cast %25 : vector<8xf32> to vector<8x1xf32>
    %cst_7 = arith.constant 0.000000e+00 : f32
    %27 = vector.broadcast %cst_7 : f32 to vector<8x1xf32>
    %28 = arith.subf %27, %26 : vector<8x1xf32>
    %c0_8 = arith.constant 0 : index
    %c0_9 = arith.constant 0 : index
    %29 = vector.load %arg3[%c0_8, %c0_9] : memref<8x1xf32, #tpu.memory_space<vmem>>, vector<8x1xf32>
    tpu.vector_store %arg3[%c0_8, %c0_9], %28 {strides = array<i32>} : memref<8x1xf32, #tpu.memory_space<vmem>>, vector<8x1xf32>,
    return
  }
  func.func @transform_0(%arg0: i32) -> (i32, i32) {
    %c0_i32 = arith.constant 0 : i32
    %c0_i32_0 = arith.constant 0 : i32
    return %arg0, %c0_i32 : i32, i32
  }
  func.func @transform_1(%arg0: i32) -> (i32, i32) {
    %c0_i32 = arith.constant 0 : i32
    %c0_i32_0 = arith.constant 0 : i32
    return %arg0, %c0_i32 : i32, i32
  }
  func.func @transform_2(%arg0: i32) -> (i32, i32) {
    %c0_i32 = arith.constant 0 : i32
    %c0_i32_0 = arith.constant 0 : i32
    return %arg0, %c0_i32 : i32, i32
  }
}

</mosaic_0001>

<llo_original>
// kernel: tpu_custom_call.1
$region0: #{tpu_custom_call.1}
  #allocation0 [shape = 'u32[]', space=smem, size = 0x4, offset = 0x4, fixed_abs, tag = 'smem constant byte address 0x4 - core index']
  #allocation1 [shape = 'u32[144,128]{1,0:T(1,128)}', space=vmem, size = 0x12000, scoped, tag = 'internal scratch']
  %s0 = inlined_call_operand.vmem [shape: f32[8,32], index: 0, kind: input, shape index: {}]
  %s1 = inlined_call_operand.vmem [shape: s32[8,1], index: 1, kind: input, shape index: {}]
  %s2 = inlined_call_operand.vmem [shape: f32[8,1], index: 2, kind: output, shape index: {}]
  %s3 = sld [smem:[#allocation0]]
  $region18: #{tpu_custom_call.1} parent=0
    _
  %s5 = ssub.s32 1, %s3
  %s6 = scalar_select 0, %s5, %s3
  // Predicated region
  $region2: #{tpu_custom_call.1} parent=0 // pred_check
    _
  $region3: #{tpu_custom_call.1} parent=0 // pred_check_branch
    %8 = sbr.rel (0) target = $region5
  $region4: #{tpu_custom_call.1} parent=0 // pred_region
    _
  $region5: #{tpu_custom_call.1} parent=0 // pred_fallthru
    _
  // Predicated region
  $region6: #{tpu_custom_call.1} parent=0 // pred_check
    _
  $region7: #{tpu_custom_call.1} parent=0 // pred_check_branch
    %10 = sbr.rel (0) target = $region9
  $region8: #{tpu_custom_call.1} parent=0 // pred_region
    _
  $region9: #{tpu_custom_call.1} parent=0 // pred_fallthru
    _
  %v11 = vld [vmem:[%s0] sm:$0xff]
  %v12 = vld [vmem:[%s1] sm:$0xff]
  %vm13 = vcmask 261120
  %v14 = vsel %vm13, %v11, -inf
  %15 = vmax.xlane.f32.xlu0 %v14
  %v16 = vpop.xlane.xlu0 %15
  %v17 = vsub.f32 %v11, %v16
  %v18 = vmul.f32 %v17, 1.442695
  %v19 = vpow.pop %v18
  %v20 = vsel %vm13, %v19, 0.0
  %21 = vadd.xlane.f32.xlu0 %v20
  %v22 = vpop.xlane.xlu0 %21
  %v23 = vlog2.pop %v22
  %v24 = vmul.f32 %v23, 0.6931472
  %v25 = vsub.f32 %v17, %v24
  %v26 = vrcp.pop %v22
  %v27 = vmul.f32 %v19, %v26
  %v28 = vlaneseq
  %v29 = vand.u32 %v28, 127
  %30 = vset.pattern.permute.xlu0 0
  %31 = vperm.xlu0 %30, %v12
  %v32 = vpop.permute.xlu0 %31
  %vm33 = vcmp.eq.s32.totalorder %v29, %v32
  %v34 = vmul.f32 %v27, %v27
  %v35 = vmul.f32 %v34, %v34
  %v36 = vmul.f32 %v35, 0.003125
  %v37 = vsel %vm33, 0.903125, %v36
  %v38 = vmul.f32 %v37, %v25
  %v39 = vsel %vm13, %v38, 0.0
  %40 = vadd.xlane.f32.xlu0 %v39
  %v41 = vpop.xlane.xlu0 %40
  %v42 = vsub.f32 0.0, %v41
  %vm43 = vcmask 7168
  %44 = vst.msk [vmem:[%s2] sm:$0xff] %vm43, %v42
  // Predicated region
  $region10: #{tpu_custom_call.1} parent=0 // pred_check
    _
  $region11: #{tpu_custom_call.1} parent=0 // pred_check_branch
    %46 = sbr.rel (0) target = $region13
  $region12: #{tpu_custom_call.1} parent=0 // pred_region
    _
  $region13: #{tpu_custom_call.1} parent=0 // pred_fallthru
    _
  // Predicated region
  $region14: #{tpu_custom_call.1} parent=0 // pred_check
    _
  $region15: #{tpu_custom_call.1} parent=0 // pred_check_branch
    %48 = sbr.rel (0) target = $region17
  $region16: #{tpu_custom_call.1} parent=0 // pred_region
    _
  $region17: #{tpu_custom_call.1} parent=0 // pred_fallthru
    _

</llo_original>
